<compile_context>
chip_gen: v5e
topology: v5e:2x2
jax: 0.10.0
libtpu: 0.0.40
codegen_flags: <defaults>
</compile_context>

<pallas_src>
from functools import partial

import jax
import jax.numpy as jnp
from jax import lax
from jax.experimental import pallas as pl
from jax.experimental.pallas import tpu as pltpu

LANES = 128  # TPU vreg lane width


# -----------------------------------------------------------------------------
# Pallas kernel: input projection + L encoder layers + decoder, all in VMEM.
# -----------------------------------------------------------------------------
def _layernorm(y, g, b, eps):
    # One-pass stats: the two lane reductions are independent, so they overlap
    # on the XLU instead of serializing behind a VPU subtract/multiply.
    inv_d = 1.0 / y.shape[-1]
    s1 = jnp.sum(y, axis=-1, keepdims=True)
    s2 = jnp.sum(y * y, axis=-1, keepdims=True)
    mu = s1 * inv_d
    var = s2 * inv_d - mu * mu
    inv = lax.rsqrt(var + eps)                       # EUP rsqrt (free slot)
    return (y - mu) * inv * g + b


def transformer_soh_kernel(x_ref, wslab_ref, vecs_ref, out_ref, *,
                           num_layers, seq_len, d_model, d_ff, eps):
    S, D, F, L = seq_len, d_model, d_ff, num_layers

    def vrow(i, w=D):                    # (1, w) bias / LN row, static slice
        return vecs_ref[i:i + 1, :w]

    idx_bpos = S
    idx_wd = S + 1 + 7 * L
    idx_bd = idx_wd + 1

    # input projection + (bias + positional encoding) folded into one add
    wp = vecs_ref[0:S, :D]                                            # (S, D)
    h = jnp.dot(x_ref[...], wp,
                preferred_element_type=jnp.float32) + vrow(idx_bpos)  # (B, D)

    # static unroll over the encoder layers (num_layers is a Python constant)
    for l in range(L):
        base = S + 1 + 7 * l
        wvo = wslab_ref[l, 0:D, 0:D]              # fused V/O projection (D, D)
        w1 = wslab_ref[l, D:2 * D, 0:F]           # (D, F)
        w2 = wslab_ref[l, 2 * D:2 * D + F, 0:D]   # (F, D)

        # --- self-attention over a length-1 sequence: softmax weight == 1,
        #     so attn(h) = out_proj(v_proj(h)) == h @ Wvo^T + bvo (pre-fused).
        attn = jnp.dot(h, wvo, preferred_element_type=jnp.float32) + vrow(base + 0)
        h = _layernorm(h + attn, vrow(base + 1), vrow(base + 2), eps)

        # --- feed-forward: Linear(D->F) + ReLU + Linear(F->D), post-norm
        ff = jnp.maximum(
            jnp.dot(h, w1, preferred_element_type=jnp.float32) + vrow(base + 3, F),
            0.0)
        ff = jnp.dot(ff, w2, preferred_element_type=jnp.float32) + vrow(base + 4)
        h = _layernorm(h + ff, vrow(base + 5), vrow(base + 6), eps)

    # decoder (pred_len == 1): VPU multiply + lane reduce; avoid an N=1 MXU pass
    wd = vrow(idx_wd)                                                 # (1, D)
    bd = vecs_ref[idx_bd:idx_bd + 1, 0:1]                             # (1, 1)
    out_ref[...] = jnp.sum(h * wd, axis=-1, keepdims=True) + bd


# -----------------------------------------------------------------------------
# One-time parameter packing (hoisted out of the per-call hot path)
# -----------------------------------------------------------------------------
def pack_params(params):
    D, S = params["wp"].shape
    layers = params["layers"]
    L = len(layers)
    F = layers[0]["w1"].shape[0]
    lanes = max(LANES, D, F)
    hi = jax.lax.Precision.HIGHEST

    def pad_row(v):
        v = jnp.asarray(v, jnp.float32).reshape(1, -1)
        return jnp.pad(v, ((0, 0), (0, lanes - v.shape[1])))

    def pad_mat(m):
        m = jnp.asarray(m, jnp.float32)
        return jnp.pad(m, ((0, 0), (0, lanes - m.shape[1])))

    rows = [pad_mat(params["wp"].T),                              # rows 0..S-1
            pad_row(params["bp"] + params["pos"][0, 0])]          # row S
    slabs = []
    for ly in layers:
        wv = ly["in_proj_w"][2 * D:]          # (D, D) V slice of in_proj
        bv = ly["in_proj_b"][2 * D:]
        wo, bo = ly["out_w"], ly["out_b"]
        # v = h @ Wv^T + bv ; attn = v @ Wo^T + bo  ==>  h @ (Wv^T Wo^T) + bvo
        wvo_t = jnp.dot(wv.T, wo.T, precision=hi)                 # (D, D)
        bvo = jnp.dot(bv, wo.T, precision=hi) + bo                # (D,)
        slabs.append(jnp.concatenate(
            [pad_mat(wvo_t), pad_mat(ly["w1"].T), pad_mat(ly["w2"].T)], axis=0))
        rows += [pad_row(bvo), pad_row(ly["ln1_g"]), pad_row(ly["ln1_b"]),
                 pad_row(ly["b1"]), pad_row(ly["b2"]),
                 pad_row(ly["ln2_g"]), pad_row(ly["ln2_b"])]
    rows += [pad_row(params["wd"]), pad_row(params["bd"])]

    return {
        "wslab": jnp.stack(slabs),               # (L, 2D + F, lanes)
        "vecs": jnp.concatenate(rows, axis=0),   # (S + 3 + 7L, lanes)
        "meta": dict(num_layers=L, seq_len=S, d_model=D, d_ff=F),
    }


# -----------------------------------------------------------------------------
# Wrapper: single grid-less pallas_call, everything VMEM-resident
# -----------------------------------------------------------------------------
@partial(jax.jit, static_argnames=("num_layers", "seq_len", "d_model", "d_ff"))
def _soh_forward(x, wslab, vecs, *, num_layers, seq_len, d_model, d_ff):
    B = x.shape[0]
    vmem = pl.BlockSpec(memory_space=pltpu.MemorySpace.VMEM)
    out = pl.pallas_call(
        partial(transformer_soh_kernel, num_layers=num_layers, seq_len=seq_len,
                d_model=d_model, d_ff=d_ff, eps=1e-5),
        out_shape=jax.ShapeDtypeStruct((B, 1), jnp.float32),
        in_specs=[vmem, vmem, vmem],
        out_specs=vmem,
    )(x.astype(jnp.float32), wslab, vecs)
    return out[:, 0]                                                  # (B,)


def transformer_soh_forward(x, packed):
    return _soh_forward(x, packed["wslab"], packed["vecs"], **packed["meta"])


# -----------------------------------------------------------------------------
# Pure-JAX reference (full Q/K/softmax attention math) for correctness checking
# -----------------------------------------------------------------------------
def _ln_ref(y, g, b, eps=1e-5):
    mu = y.mean(-1, keepdims=True)
    var = ((y - mu) ** 2).mean(-1, keepdims=True)
    return (y - mu) / jnp.sqrt(var + eps) * g + b


def transformer_soh_reference(x, params):
    mm = lambda a, b: jnp.dot(a, b, precision=jax.lax.Precision.HIGHEST)
    B = x.shape[0]
    D = params["wp"].shape[0]
    nhead = params["nhead"]
    dk = D // nhead

    h = mm(x, params["wp"].T) + params["bp"] + params["pos"][0, 0]    # (B, D)
    for ly in params["layers"]:
        w_in, b_in = ly["in_proj_w"], ly["in_proj_b"]
        q = mm(h, w_in[:D].T) + b_in[:D]
        k = mm(h, w_in[D:2 * D].T) + b_in[D:2 * D]
        v = mm(h, w_in[2 * D:].T) + b_in[2 * D:]
        qh = q.reshape(B, nhead, dk)
        kh = k.reshape(B, nhead, dk)
        vh = v.reshape(B, nhead, dk)
        scores = jnp.sum(qh * kh, axis=-1, keepdims=True) / jnp.sqrt(float(dk))
        w = jax.nn.softmax(scores, axis=-1)          # length-1 key axis -> 1.0
        attn = (w * vh).reshape(B, D)
        attn = mm(attn, ly["out_w"].T) + ly["out_b"]
        h = _ln_ref(h + attn, ly["ln1_g"], ly["ln1_b"])
        ff = mm(jax.nn.relu(mm(h, ly["w1"].T) + ly["b1"]), ly["w2"].T) + ly["b2"]
        h = _ln_ref(h + ff, ly["ln2_g"], ly["ln2_b"])
    out = mm(h, params["wd"].T) + params["bd"]
    return out.squeeze()


# -----------------------------------------------------------------------------
def init_params(key, seq_len=16, model_dim=64, num_layers=2, nhead=4,
                dim_ff=128, pred_len=1):
    D, F = model_dim, dim_ff
    keys = iter(jax.random.split(key, 8 + 12 * num_layers))
    s = 0.1

    def nrm(shape):
        return jax.random.normal(next(keys), shape, jnp.float32) * s

    layers = []
    for _ in range(num_layers):
        layers.append({
            "in_proj_w": nrm((3 * D, D)),
            "in_proj_b": nrm((3 * D,)),
            "out_w": nrm((D, D)),
            "out_b": nrm((D,)),
            "ln1_g": 1.0 + nrm((D,)),
            "ln1_b": nrm((D,)),
            "w1": nrm((F, D)),
            "b1": nrm((F,)),
            "w2": nrm((D, F)),
            "b2": nrm((D,)),
            "ln2_g": 1.0 + nrm((D,)),
            "ln2_b": nrm((D,)),
        })
    return {
        "wp": nrm((D, seq_len)),        # nn.Linear(seq_len, D) weight (out, in)
        "bp": nrm((D,)),
        "pos": nrm((1, seq_len, D)),    # positional_encoding (only [:, :1] used)
        "wd": nrm((pred_len, D)),       # decoder Linear(D, pred_len)
        "bd": nrm((pred_len,)),
        "nhead": nhead,
        "layers": layers,
    }


if __name__ == "__main__":
    B, SEQ_LEN = 8, 16
    MODEL_DIM, NUM_LAYERS, NHEAD = 64, 2, 4

    key = jax.random.PRNGKey(0)
    kx, kp = jax.random.split(key)
    x = jax.random.normal(kx, (B, SEQ_LEN), jnp.float32)
    params = init_params(kp, seq_len=SEQ_LEN, model_dim=MODEL_DIM,
                         num_layers=NUM_LAYERS, nhead=NHEAD)

    packed = pack_params(params)                 # one-time, off the hot path
    out = jax.block_until_ready(transformer_soh_forward(x, packed))
    ref = jax.block_until_ready(transformer_soh_reference(x, params))

    assert out.shape == (B,), out.shape
    assert jnp.allclose(out, ref, atol=1e-4, rtol=1e-3), (out, ref)

    print("KERNEL_OK")
</pallas_src>

<mosaic_0001>
module attributes {stable_mosaic.version = 11 : i64} {
  func.func @transformer_soh_kernel(%arg0: memref<8x16xf32, #tpu.memory_space<vmem>>, %arg1: memref<2x256x128xf32, #tpu.memory_space<vmem>>, %arg2: memref<33x128xf32, #tpu.memory_space<vmem>>, %arg3: memref<8x1xf32, #tpu.memory_space<vmem>>) attributes {dimension_semantics = [], scalar_prefetch = 0 : i64, scratch_operands = 0 : i64, tpu.core_type = #tpu.core_type<tc>} {
    %c0 = arith.constant 0 : index
    %c0_0 = arith.constant 0 : index
    %0 = vector.load %arg2[%c0, %c0_0] : memref<33x128xf32, #tpu.memory_space<vmem>>, vector<16x64xf32>
    %c0_1 = arith.constant 0 : index
    %c0_2 = arith.constant 0 : index
    %1 = vector.load %arg0[%c0_1, %c0_2] : memref<8x16xf32, #tpu.memory_space<vmem>>, vector<8x16xf32>
    %cst = arith.constant dense<0.000000e+00> : vector<8x64xf32>
    %2 = tpu.matmul %1, %0, %cst {dimension_numbers = #tpu.dot_dimension_numbers<[1], [0], [0], [1], [0, 0, 1, 1], [], []>} : vector<8x16xf32>, vector<16x64xf32>, vector<8x64xf32> -> vector<8x64xf32>
    %c16 = arith.constant 16 : index
    %c0_3 = arith.constant 0 : index
    %3 = vector.load %arg2[%c16, %c0_3] : memref<33x128xf32, #tpu.memory_space<vmem>>, vector<1x64xf32>
    %4 = vector.broadcast %3 : vector<1x64xf32> to vector<8x64xf32>
    %5 = arith.addf %2, %4 : vector<8x64xf32>
    %c0_4 = arith.constant 0 : index
    %c0_5 = arith.constant 0 : index
    %c0_6 = arith.constant 0 : index
    %6 = vector.load %arg1[%c0_4, %c0_5, %c0_6] : memref<2x256x128xf32, #tpu.memory_space<vmem>>, vector<1x64x64xf32>
    %7 = vector.shape_cast %6 : vector<1x64x64xf32> to vector<64x64xf32>
    %c0_7 = arith.constant 0 : index
    %c64 = arith.constant 64 : index
    %c0_8 = arith.constant 0 : index
    %8 = vector.load %arg1[%c0_7, %c64, %c0_8] : memref<2x256x128xf32, #tpu.memory_space<vmem>>, vector<1x64x128xf32>
    %9 = vector.shape_cast %8 : vector<1x64x128xf32> to vector<64x128xf32>
    %c0_9 = arith.constant 0 : index
    %c128 = arith.constant 128 : index
    %c0_10 = arith.constant 0 : index
    %10 = vector.load %arg1[%c0_9, %c128, %c0_10] : memref<2x256x128xf32, #tpu.memory_space<vmem>>, vector<1x128x64xf32>
    %11 = vector.shape_cast %10 : vector<1x128x64xf32> to vector<128x64xf32>
    %cst_11 = arith.constant dense<0.000000e+00> : vector<8x64xf32>
    %12 = tpu.matmul %5, %7, %cst_11 {dimension_numbers = #tpu.dot_dimension_numbers<[1], [0], [0], [1], [0, 0, 1, 1], [], []>} : vector<8x64xf32>, vector<64x64xf32>, vector<8x64xf32> -> vector<8x64xf32>
    %c17 = arith.constant 17 : index
    %c0_12 = arith.constant 0 : index
    %13 = vector.load %arg2[%c17, %c0_12] : memref<33x128xf32, #tpu.memory_space<vmem>>, vector<1x64xf32>
    %14 = vector.broadcast %13 : vector<1x64xf32> to vector<8x64xf32>
    %15 = arith.addf %12, %14 : vector<8x64xf32>
    %16 = arith.addf %5, %15 : vector<8x64xf32>
    %c18 = arith.constant 18 : index
    %c0_13 = arith.constant 0 : index
    %17 = vector.load %arg2[%c18, %c0_13] : memref<33x128xf32, #tpu.memory_space<vmem>>, vector<1x64xf32>
    %c19 = arith.constant 19 : index
    %c0_14 = arith.constant 0 : index
    %18 = vector.load %arg2[%c19, %c0_14] : memref<33x128xf32, #tpu.memory_space<vmem>>, vector<1x64xf32>
    %cst_15 = arith.constant dense<0.000000e+00> : vector<8xf32>
    %19 = vector.multi_reduction <add>, %16, %cst_15 [1] : vector<8x64xf32> to vector<8xf32>
    %20 = vector.shape_cast %19 : vector<8xf32> to vector<8x1xf32>
    %21 = arith.mulf %16, %16 : vector<8x64xf32>
    %cst_16 = arith.constant dense<0.000000e+00> : vector<8xf32>
    %22 = vector.multi_reduction <add>, %21, %cst_16 [1] : vector<8x64xf32> to vector<8xf32>
    %23 = vector.shape_cast %22 : vector<8xf32> to vector<8x1xf32>
    %cst_17 = arith.constant 1.562500e-02 : f32
    %24 = vector.broadcast %cst_17 : f32 to vector<8x1xf32>
    %25 = arith.mulf %20, %24 : vector<8x1xf32>
    %cst_18 = arith.constant 1.562500e-02 : f32
    %26 = vector.broadcast %cst_18 : f32 to vector<8x1xf32>
    %27 = arith.mulf %23, %26 : vector<8x1xf32>
    %28 = arith.mulf %25, %25 : vector<8x1xf32>
    %29 = arith.subf %27, %28 : vector<8x1xf32>
    %cst_19 = arith.constant 9.99999974E-6 : f32
    %30 = vector.broadcast %cst_19 : f32 to vector<8x1xf32>
    %31 = arith.addf %29, %30 : vector<8x1xf32>
    %32 = math.rsqrt %31 : vector<8x1xf32>
    %33 = vector.broadcast %25 : vector<8x1xf32> to vector<8x64xf32>
    %34 = arith.subf %16, %33 : vector<8x64xf32>
    %35 = vector.broadcast %32 : vector<8x1xf32> to vector<8x64xf32>
    %36 = arith.mulf %34, %35 : vector<8x64xf32>
    %37 = vector.broadcast %17 : vector<1x64xf32> to vector<8x64xf32>
    %38 = arith.mulf %36, %37 : vector<8x64xf32>
    %39 = vector.broadcast %18 : vector<1x64xf32> to vector<8x64xf32>
    %40 = arith.addf %38, %39 : vector<8x64xf32>
    %cst_20 = arith.constant dense<0.000000e+00> : vector<8x128xf32>
    %41 = tpu.matmul %40, %9, %cst_20 {dimension_numbers = #tpu.dot_dimension_numbers<[1], [0], [0], [1], [0, 0, 1, 1], [], []>} : vector<8x64xf32>, vector<64x128xf32>, vector<8x128xf32> -> vector<8x128xf32>
    %c20 = arith.constant 20 : index
    %c0_21 = arith.constant 0 : index
    %42 = vector.load %arg2[%c20, %c0_21] : memref<33x128xf32, #tpu.memory_space<vmem>>, vector<1x128xf32>
    %43 = vector.broadcast %42 : vector<1x128xf32> to vector<8x128xf32>
    %44 = arith.addf %41, %43 : vector<8x128xf32>
    %cst_22 = arith.constant 0.000000e+00 : f32
    %45 = vector.broadcast %cst_22 : f32 to vector<8x128xf32>
    %46 = arith.maximumf %44, %45 : vector<8x128xf32>
    %cst_23 = arith.constant dense<0.000000e+00> : vector<8x64xf32>
    %47 = tpu.matmul %46, %11, %cst_23 {dimension_numbers = #tpu.dot_dimension_numbers<[1], [0], [0], [1], [0, 0, 1, 1], [], []>} : vector<8x128xf32>, vector<128x64xf32>, vector<8x64xf32> -> vector<8x64xf32>
    %c21 = arith.constant 21 : index
    %c0_24 = arith.constant 0 : index
    %48 = vector.load %arg2[%c21, %c0_24] : memref<33x128xf32, #tpu.memory_space<vmem>>, vector<1x64xf32>
    %49 = vector.broadcast %48 : vector<1x64xf32> to vector<8x64xf32>
    %50 = arith.addf %47, %49 : vector<8x64xf32>
    %51 = arith.addf %40, %50 : vector<8x64xf32>
    %c22 = arith.constant 22 : index
    %c0_25 = arith.constant 0 : index
    %52 = vector.load %arg2[%c22, %c0_25] : memref<33x128xf32, #tpu.memory_space<vmem>>, vector<1x64xf32>
    %c23 = arith.constant 23 : index
    %c0_26 = arith.constant 0 : index
    %53 = vector.load %arg2[%c23, %c0_26] : memref<33x128xf32, #tpu.memory_space<vmem>>, vector<1x64xf32>
    %cst_27 = arith.constant dense<0.000000e+00> : vector<8xf32>
    %54 = vector.multi_reduction <add>, %51, %cst_27 [1] : vector<8x64xf32> to vector<8xf32>
    %55 = vector.shape_cast %54 : vector<8xf32> to vector<8x1xf32>
    %56 = arith.mulf %51, %51 : vector<8x64xf32>
    %cst_28 = arith.constant dense<0.000000e+00> : vector<8xf32>
    %57 = vector.multi_reduction <add>, %56, %cst_28 [1] : vector<8x64xf32> to vector<8xf32>
    %58 = vector.shape_cast %57 : vector<8xf32> to vector<8x1xf32>
    %cst_29 = arith.constant 1.562500e-02 : f32
    %59 = vector.broadcast %cst_29 : f32 to vector<8x1xf32>
    %60 = arith.mulf %55, %59 : vector<8x1xf32>
    %cst_30 = arith.constant 1.562500e-02 : f32
    %61 = vector.broadcast %cst_30 : f32 to vector<8x1xf32>
    %62 = arith.mulf %58, %61 : vector<8x1xf32>
    %63 = arith.mulf %60, %60 : vector<8x1xf32>
    %64 = arith.subf %62, %63 : vector<8x1xf32>
    %cst_31 = arith.constant 9.99999974E-6 : f32
    %65 = vector.broadcast %cst_31 : f32 to vector<8x1xf32>
    %66 = arith.addf %64, %65 : vector<8x1xf32>
    %67 = math.rsqrt %66 : vector<8x1xf32>
    %68 = vector.broadcast %60 : vector<8x1xf32> to vector<8x64xf32>
    %69 = arith.subf %51, %68 : vector<8x64xf32>
    %70 = vector.broadcast %67 : vector<8x1xf32> to vector<8x64xf32>
    %71 = arith.mulf %69, %70 : vector<8x64xf32>
    %72 = vector.broadcast %52 : vector<1x64xf32> to vector<8x64xf32>
    %73 = arith.mulf %71, %72 : vector<8x64xf32>
    %74 = vector.broadcast %53 : vector<1x64xf32> to vector<8x64xf32>
    %75 = arith.addf %73, %74 : vector<8x64xf32>
    %c1 = arith.constant 1 : index
    %c0_32 = arith.constant 0 : index
    %c0_33 = arith.constant 0 : index
    %76 = vector.load %arg1[%c1, %c0_32, %c0_33] : memref<2x256x128xf32, #tpu.memory_space<vmem>>, vector<1x64x64xf32>
    %77 = vector.shape_cast %76 : vector<1x64x64xf32> to vector<64x64xf32>
    %c1_34 = arith.constant 1 : index
    %c64_35 = arith.constant 64 : index
    %c0_36 = arith.constant 0 : index
    %78 = vector.load %arg1[%c1_34, %c64_35, %c0_36] : memref<2x256x128xf32, #tpu.memory_space<vmem>>, vector<1x64x128xf32>
    %79 = vector.shape_cast %78 : vector<1x64x128xf32> to vector<64x128xf32>
    %c1_37 = arith.constant 1 : index
    %c128_38 = arith.constant 128 : index
    %c0_39 = arith.constant 0 : index
    %80 = vector.load %arg1[%c1_37, %c128_38, %c0_39] : memref<2x256x128xf32, #tpu.memory_space<vmem>>, vector<1x128x64xf32>
    %81 = vector.shape_cast %80 : vector<1x128x64xf32> to vector<128x64xf32>
    %cst_40 = arith.constant dense<0.000000e+00> : vector<8x64xf32>
    %82 = tpu.matmul %75, %77, %cst_40 {dimension_numbers = #tpu.dot_dimension_numbers<[1], [0], [0], [1], [0, 0, 1, 1], [], []>} : vector<8x64xf32>, vector<64x64xf32>, vector<8x64xf32> -> vector<8x64xf32>
    %c24 = arith.constant 24 : index
    %c0_41 = arith.constant 0 : index
    %83 = vector.load %arg2[%c24, %c0_41] : memref<33x128xf32, #tpu.memory_space<vmem>>, vector<1x64xf32>
    %84 = vector.broadcast %83 : vector<1x64xf32> to vector<8x64xf32>
    %85 = arith.addf %82, %84 : vector<8x64xf32>
    %86 = arith.addf %75, %85 : vector<8x64xf32>
    %c25 = arith.constant 25 : index
    %c0_42 = arith.constant 0 : index
    %87 = vector.load %arg2[%c25, %c0_42] : memref<33x128xf32, #tpu.memory_space<vmem>>, vector<1x64xf32>
    %c26 = arith.constant 26 : index
    %c0_43 = arith.constant 0 : index
    %88 = vector.load %arg2[%c26, %c0_43] : memref<33x128xf32, #tpu.memory_space<vmem>>, vector<1x64xf32>
    %cst_44 = arith.constant dense<0.000000e+00> : vector<8xf32>
    %89 = vector.multi_reduction <add>, %86, %cst_44 [1] : vector<8x64xf32> to vector<8xf32>
    %90 = vector.shape_cast %89 : vector<8xf32> to vector<8x1xf32>
    %91 = arith.mulf %86, %86 : vector<8x64xf32>
    %cst_45 = arith.constant dense<0.000000e+00> : vector<8xf32>
    %92 = vector.multi_reduction <add>, %91, %cst_45 [1] : vector<8x64xf32> to vector<8xf32>
    %93 = vector.shape_cast %92 : vector<8xf32> to vector<8x1xf32>
    %cst_46 = arith.constant 1.562500e-02 : f32
    %94 = vector.broadcast %cst_46 : f32 to vector<8x1xf32>
    %95 = arith.mulf %90, %94 : vector<8x1xf32>
    %cst_47 = arith.constant 1.562500e-02 : f32
    %96 = vector.broadcast %cst_47 : f32 to vector<8x1xf32>
    %97 = arith.mulf %93, %96 : vector<8x1xf32>
    %98 = arith.mulf %95, %95 : vector<8x1xf32>
    %99 = arith.subf %97, %98 : vector<8x1xf32>
    %cst_48 = arith.constant 9.99999974E-6 : f32
    %100 = vector.broadcast %cst_48 : f32 to vector<8x1xf32>
    %101 = arith.addf %99, %100 : vector<8x1xf32>
    %102 = math.rsqrt %101 : vector<8x1xf32>
    %103 = vector.broadcast %95 : vector<8x1xf32> to vector<8x64xf32>
    %104 = arith.subf %86, %103 : vector<8x64xf32>
    %105 = vector.broadcast %102 : vector<8x1xf32> to vector<8x64xf32>
    %106 = arith.mulf %104, %105 : vector<8x64xf32>
    %107 = vector.broadcast %87 : vector<1x64xf32> to vector<8x64xf32>
    %108 = arith.mulf %106, %107 : vector<8x64xf32>
    %109 = vector.broadcast %88 : vector<1x64xf32> to vector<8x64xf32>
    %110 = arith.addf %108, %109 : vector<8x64xf32>
    %cst_49 = arith.constant dense<0.000000e+00> : vector<8x128xf32>
    %111 = tpu.matmul %110, %79, %cst_49 {dimension_numbers = #tpu.dot_dimension_numbers<[1], [0], [0], [1], [0, 0, 1, 1], [], []>} : vector<8x64xf32>, vector<64x128xf32>, vector<8x128xf32> -> vector<8x128xf32>
    %c27 = arith.constant 27 : index
    %c0_50 = arith.constant 0 : index
    %112 = vector.load %arg2[%c27, %c0_50] : memref<33x128xf32, #tpu.memory_space<vmem>>, vector<1x128xf32>
    %113 = vector.broadcast %112 : vector<1x128xf32> to vector<8x128xf32>
    %114 = arith.addf %111, %113 : vector<8x128xf32>
    %cst_51 = arith.constant 0.000000e+00 : f32
    %115 = vector.broadcast %cst_51 : f32 to vector<8x128xf32>
    %116 = arith.maximumf %114, %115 : vector<8x128xf32>
    %cst_52 = arith.constant dense<0.000000e+00> : vector<8x64xf32>
    %117 = tpu.matmul %116, %81, %cst_52 {dimension_numbers = #tpu.dot_dimension_numbers<[1], [0], [0], [1], [0, 0, 1, 1], [], []>} : vector<8x128xf32>, vector<128x64xf32>, vector<8x64xf32> -> vector<8x64xf32>
    %c28 = arith.constant 28 : index
    %c0_53 = arith.constant 0 : index
    %118 = vector.load %arg2[%c28, %c0_53] : memref<33x128xf32, #tpu.memory_space<vmem>>, vector<1x64xf32>
    %119 = vector.broadcast %118 : vector<1x64xf32> to vector<8x64xf32>
    %120 = arith.addf %117, %119 : vector<8x64xf32>
    %121 = arith.addf %110, %120 : vector<8x64xf32>
    %c29 = arith.constant 29 : index
    %c0_54 = arith.constant 0 : index
    %122 = vector.load %arg2[%c29, %c0_54] : memref<33x128xf32, #tpu.memory_space<vmem>>, vector<1x64xf32>
    %c30 = arith.constant 30 : index
    %c0_55 = arith.constant 0 : index
    %123 = vector.load %arg2[%c30, %c0_55] : memref<33x128xf32, #tpu.memory_space<vmem>>, vector<1x64xf32>
    %cst_56 = arith.constant dense<0.000000e+00> : vector<8xf32>
    %124 = vector.multi_reduction <add>, %121, %cst_56 [1] : vector<8x64xf32> to vector<8xf32>
    %125 = vector.shape_cast %124 : vector<8xf32> to vector<8x1xf32>
    %126 = arith.mulf %121, %121 : vector<8x64xf32>
    %cst_57 = arith.constant dense<0.000000e+00> : vector<8xf32>
    %127 = vector.multi_reduction <add>, %126, %cst_57 [1] : vector<8x64xf32> to vector<8xf32>
    %128 = vector.shape_cast %127 : vector<8xf32> to vector<8x1xf32>
    %cst_58 = arith.constant 1.562500e-02 : f32
    %129 = vector.broadcast %cst_58 : f32 to vector<8x1xf32>
    %130 = arith.mulf %125, %129 : vector<8x1xf32>
    %cst_59 = arith.constant 1.562500e-02 : f32
    %131 = vector.broadcast %cst_59 : f32 to vector<8x1xf32>
    %132 = arith.mulf %128, %131 : vector<8x1xf32>
    %133 = arith.mulf %130, %130 : vector<8x1xf32>
    %134 = arith.subf %132, %133 : vector<8x1xf32>
    %cst_60 = arith.constant 9.99999974E-6 : f32
    %135 = vector.broadcast %cst_60 : f32 to vector<8x1xf32>
    %136 = arith.addf %134, %135 : vector<8x1xf32>
    %137 = math.rsqrt %136 : vector<8x1xf32>
    %138 = vector.broadcast %130 : vector<8x1xf32> to vector<8x64xf32>
    %139 = arith.subf %121, %138 : vector<8x64xf32>
    %140 = vector.broadcast %137 : vector<8x1xf32> to vector<8x64xf32>
    %141 = arith.mulf %139, %140 : vector<8x64xf32>
    %142 = vector.broadcast %122 : vector<1x64xf32> to vector<8x64xf32>
    %143 = arith.mulf %141, %142 : vector<8x64xf32>
    %144 = vector.broadcast %123 : vector<1x64xf32> to vector<8x64xf32>
    %145 = arith.addf %143, %144 : vector<8x64xf32>
    %c31 = arith.constant 31 : index
    %c0_61 = arith.constant 0 : index
    %146 = vector.load %arg2[%c31, %c0_61] : memref<33x128xf32, #tpu.memory_space<vmem>>, vector<1x64xf32>
    %c32 = arith.constant 32 : index
    %c0_62 = arith.constant 0 : index
    %147 = vector.load %arg2[%c32, %c0_62] : memref<33x128xf32, #tpu.memory_space<vmem>>, vector<1x1xf32>
    %148 = vector.broadcast %146 : vector<1x64xf32> to vector<8x64xf32>
    %149 = arith.mulf %145, %148 : vector<8x64xf32>
    %cst_63 = arith.constant dense<0.000000e+00> : vector<8xf32>
    %150 = vector.multi_reduction <add>, %149, %cst_63 [1] : vector<8x64xf32> to vector<8xf32>
    %151 = vector.shape_cast %150 : vector<8xf32> to vector<8x1xf32>
    %152 = vector.broadcast %147 : vector<1x1xf32> to vector<8x1xf32>
    %153 = arith.addf %151, %152 : vector<8x1xf32>
    %c0_64 = arith.constant 0 : index
    %c0_65 = arith.constant 0 : index
    %154 = vector.load %arg3[%c0_64, %c0_65] : memref<8x1xf32, #tpu.memory_space<vmem>>, vector<8x1xf32>
    tpu.vector_store %arg3[%c0_64, %c0_65], %153 {strides = array<i32>} : memref<8x1xf32, #tpu.memory_space<vmem>>, vector<8x1xf32>,
    return
  }
}

</mosaic_0001>

<llo_original>
// kernel: _soh_forward.1
$region0: #{_soh_forward.1}
  #allocation0 [shape = 'u32[]', space=smem, size = 0x4, offset = 0x4, fixed_abs, tag = 'smem constant byte address 0x4 - core index']
  #allocation1 [shape = 'u32[72,128]{1,0:T(1,128)}', space=vmem, size = 0x9000, scoped, tag = 'internal scratch']
  %s0 = inlined_call_operand.hbm [shape: f32[8,16], index: 0, kind: input, shape index: {}]
  %s1 = inlined_call_operand.hbm [shape: f32[2,256,128], index: 1, kind: input, shape index: {}]
  %s2 = inlined_call_operand.hbm [shape: f32[33,128], index: 2, kind: input, shape index: {}]
  %s3 = inlined_call_operand.vmem [shape: f32[8,1], index: 3, kind: output, shape index: {}]
  %s4 = sld [smem:[#allocation0]]
  $region34: #{_soh_forward.1} parent=0
    _
  %s6 = ssub.s32 1, %s4
  %s7 = scalar_select 0, %s6, %s4
  $region1: #{_soh_forward.1} parent=0
    #allocation2 [shape = 'u8[4096]{0}', space=vmem, size = 0x1000, scoped, tag = 'input window, operand 0, single buffered']
    #allocation3 [shape = 's32[1]{0}', space=sflag, size = 0x4, scoped, tag = 'scoped memory for _soh_forward.1']
    #allocation4 [shape = 'u8[262144]{0}', space=vmem, size = 0x40000, scoped, tag = 'input window, operand 1, single buffered']
    #allocation5 [shape = 's32[1]{0}', space=sflag, size = 0x4, scoped, tag = 'scoped memory for _soh_forward.1']
    #allocation6 [shape = 'u8[20480]{0}', space=vmem, size = 0x5000, scoped, tag = 'input window, operand 2, single buffered']
    %8 = vsyncpa [#allocation3], 0
    %9 = vsyncpa [#allocation5], 0
    // Predicated region
    $region2: #{_soh_forward.1} parent=1 // pred_check
      _
    $region3: #{_soh_forward.1} parent=1 // pred_check_branch
      %11 = sbr.rel (0) target = $region5
    $region4: #{_soh_forward.1} parent=1 // pred_region
      %13 = vsyncadd [#allocation3], 0
      %s15 = sshll.u32 %s0, 4
      %s16 = int_to_ptr.hbm [resolvable:$true] %s15
      %s17 = sshll.u32 [#allocation2], 4
      %s18 = int_to_ptr.vmem [resolvable:$true] %s17
      %20 = dma.hbm_to_vmem [thread:$0]  %s16, 128, %s18, [#allocation3]
    $region5: #{_soh_forward.1} parent=1 // pred_fallthru
      _
    // Predicated region
    $region6: #{_soh_forward.1} parent=1 // pred_check
      _
    $region7: #{_soh_forward.1} parent=1 // pred_check_branch
      %22 = sbr.rel (0) target = $region9
    $region8: #{_soh_forward.1} parent=1 // pred_region
      %24 = vsyncadd [#allocation5], 0
      %s25 = sshll.u32 %s1, 4
      %s26 = int_to_ptr.hbm [resolvable:$true] %s25
      %s27 = sshll.u32 [#allocation4], 4
      %s28 = int_to_ptr.vmem [resolvable:$true] %s27
      %33 = dma.hbm_to_vmem [thread:$0]  %s26, 8192, %s28, [#allocation5], 128, 128, 8
    $region9: #{_soh_forward.1} parent=1 // pred_fallthru
      _
    // Predicated region
    $region10: #{_soh_forward.1} parent=1 // pred_check
      _
    $region11: #{_soh_forward.1} parent=1 // pred_check_branch
      %35 = sbr.rel (0) target = $region13
    $region12: #{_soh_forward.1} parent=1 // pred_region
      %37 = vsyncadd [#allocation5], 0
      %s38 = sshll.u32 %s2, 4
      %s39 = int_to_ptr.hbm [resolvable:$true] %s38
      %s40 = sshll.u32 [#allocation6], 4
      %s41 = int_to_ptr.vmem [resolvable:$true] %s40
      %46 = dma.hbm_to_vmem [thread:$0]  %s39, 640, %s41, [#allocation5], 128, 128, 8
    $region13: #{_soh_forward.1} parent=1 // pred_fallthru
      _
    // Predicated region
    $region14: #{_soh_forward.1} parent=1 // pred_check
      _
    $region15: #{_soh_forward.1} parent=1 // pred_check_branch
      %48 = sbr.rel (0) target = $region17
    $region16: #{_soh_forward.1} parent=1 // pred_region
      %50 = dma.done [#allocation3], 128
    $region17: #{_soh_forward.1} parent=1 // pred_fallthru
      _
    // Predicated region
    $region18: #{_soh_forward.1} parent=1 // pred_check
      _
    $region19: #{_soh_forward.1} parent=1 // pred_check_branch
      %52 = sbr.rel (0) target = $region21
    $region20: #{_soh_forward.1} parent=1 // pred_region
      %54 = dma.done [#allocation5], 8192
    $region21: #{_soh_forward.1} parent=1 // pred_fallthru
      _
    // Predicated region
    $region22: #{_soh_forward.1} parent=1 // pred_check
      _
    $region23: #{_soh_forward.1} parent=1 // pred_check_branch
      %56 = sbr.rel (0) target = $region25
    $region24: #{_soh_forward.1} parent=1 // pred_region
      %58 = dma.done [#allocation5], 640
    $region25: #{_soh_forward.1} parent=1 // pred_fallthru
      _
    %v59 = vld [vmem:[#allocation6] sm:$0xff]
    %v60 = vld [vmem:[#allocation6 + $0x8] sm:$0xff]
    %v61 = vld [vmem:[#allocation2] sm:$0xff]
    %v62 = vld [vmem:[#allocation6 + $0x10] sm:$0x1]
    %v63 = vperm.slane %v62, 0
    %vm64 = vcmask 130048
    %v66 = vsel %vm64, %v61, 0
    %68 = vmatpush.msra.mxu0 0.0
    %69 = vmatpush.msra.mxu0 0.0
    %70 = vmatpush.msra.mxu0 0.0
    %71 = vmatpush.msra.mxu0 0.0
    %72 = vmatpush.msra.mxu0 0.0
    %73 = vmatpush.msra.mxu0 0.0
    %74 = vmatpush.msra.mxu0 0.0
    %75 = vmatpush.msra.mxu0 0.0
    %76 = vmatpush.msra.mxu0 0.0
    %77 = vmatpush.msra.mxu0 0.0
    %78 = vmatpush.msra.mxu0 0.0
    %79 = vmatpush.msra.mxu0 0.0
    %80 = vmatpush.msra.mxu0 0.0
    %81 = vmatpush.msra.mxu0 0.0
    %82 = vmatpush.msra.mxu0 %v60
    %83 = vmatpush.msra.mxu0 %v59
    %84 = vmatmul.f32.gmra.mxu0 %v66
    %v85 = vpop.f32.mrf.mxu0
    %v86 = vadd.f32 %v63, %v85
    %87 = vdwg.mxu0
    %v88 = vld [vmem:[#allocation4] sm:$0xff]
    %v89 = vld [vmem:[#allocation4 + $0x8] sm:$0xff]
    %v90 = vld [vmem:[#allocation4 + $0x10] sm:$0xff]
    %v91 = vld [vmem:[#allocation4 + $0x18] sm:$0xff]
    %v92 = vld [vmem:[#allocation4 + $0x20] sm:$0xff]
    %v93 = vld [vmem:[#allocation4 + $0x28] sm:$0xff]
    %v94 = vld [vmem:[#allocation4 + $0x30] sm:$0xff]
    %v95 = vld [vmem:[#allocation4 + $0x38] sm:$0xff]
    %v96 = vld [vmem:[#allocation4 + $0x40] sm:$0xff]
    %v97 = vld [vmem:[#allocation4 + $0x48] sm:$0xff]
    %v98 = vld [vmem:[#allocation4 + $0x50] sm:$0xff]
    %v99 = vld [vmem:[#allocation4 + $0x58] sm:$0xff]
    %v100 = vld [vmem:[#allocation4 + $0x60] sm:$0xff]
    %v101 = vld [vmem:[#allocation4 + $0x68] sm:$0xff]
    %v102 = vld [vmem:[#allocation4 + $0x70] sm:$0xff]
    %v103 = vld [vmem:[#allocation4 + $0x78] sm:$0xff]
    %v104 = vld [vmem:[#allocation4 + $0x80] sm:$0xff]
    %v105 = vld [vmem:[#allocation4 + $0x88] sm:$0xff]
    %v106 = vld [vmem:[#allocation4 + $0x90] sm:$0xff]
    %v107 = vld [vmem:[#allocation4 + $0x98] sm:$0xff]
    %v108 = vld [vmem:[#allocation4 + $0xa0] sm:$0xff]
    %v109 = vld [vmem:[#allocation4 + $0xa8] sm:$0xff]
    %v110 = vld [vmem:[#allocation4 + $0xb0] sm:$0xff]
    %v111 = vld [vmem:[#allocation4 + $0xb8] sm:$0xff]
    %v112 = vld [vmem:[#allocation4 + $0xc0] sm:$0xff]
    %v113 = vld [vmem:[#allocation4 + $0xc8] sm:$0xff]
    %v114 = vld [vmem:[#allocation4 + $0xd0] sm:$0xff]
    %v115 = vld [vmem:[#allocation4 + $0xd8] sm:$0xff]
    %v116 = vld [vmem:[#allocation4 + $0xe0] sm:$0xff]
    %v117 = vld [vmem:[#allocation4 + $0xe8] sm:$0xff]
    %v118 = vld [vmem:[#allocation4 + $0xf0] sm:$0xff]
    %v119 = vld [vmem:[#allocation4 + $0xf8] sm:$0xff]
    %v120 = vld [vmem:[#allocation6 + $0x11] sm:$0x1]
    %v121 = vperm.slane %v120, 0
    %vm122 = vcmask 523264
    %v124 = vsel %vm122, %v86, 0
    %126 = vmatpush.msra.mxu0 0.0
    %127 = vmatpush.msra.mxu0 0.0
    %128 = vmatpush.msra.mxu0 0.0
    %129 = vmatpush.msra.mxu0 0.0
    %130 = vmatpush.msra.mxu0 0.0
    %131 = vmatpush.msra.mxu0 0.0
    %132 = vmatpush.msra.mxu0 0.0
    %133 = vmatpush.msra.mxu0 0.0
    %134 = vmatpush.msra.mxu0 %v95
    %135 = vmatpush.msra.mxu0 %v94
    %136 = vmatpush.msra.mxu0 %v93
    %137 = vmatpush.msra.mxu0 %v92
    %138 = vmatpush.msra.mxu0 %v91
    %139 = vmatpush.msra.mxu0 %v90
    %140 = vmatpush.msra.mxu0 %v89
    %141 = vmatpush.msra.mxu0 %v88
    %142 = vmatmul.f32.gmra.mxu0 %v124
    %v143 = vpop.f32.mrf.mxu0
    %v144 = vadd.f32 %v121, %v143
    %145 = vdwg.mxu0
    %v146 = vadd.f32 %v86, %v144
    %v147 = vld [vmem:[#allocation6 + $0x12] sm:$0x1]
    %v148 = vld [vmem:[#allocation6 + $0x13] sm:$0x1]
    %v149 = vsel %vm122, %v146, 0.0
    %150 = vadd.xlane.f32.xlu0 %v149
    %v151 = vpop.xlane.xlu0 %150
    %v152 = vmul.f32 %v146, %v146
    %v153 = vsel %vm122, %v152, 0.0
    %154 = vadd.xlane.f32.xlu0 %v153
    %v155 = vpop.xlane.xlu0 %154
    %v156 = vmul.f32 %v151, 0.015625
    %v157 = vmul.f32 %v155, 0.015625
    %v158 = vmul.f32 %v156, %v156
    %v159 = vsub.f32 %v157, %v158
    %v160 = vadd.f32 %v159, 1e-05
    %v161 = vrsqrt.pop %v160
    %v162 = vmul.f32 %v161, %v160
    %v163 = vmul.f32 %v162, %v161
    %v164 = vmul.f32 0.5, %v163
    %v165 = vsub.f32 1.5, %v164
    %v166 = vmul.f32 %v161, %v165
    %vm167 = vweird.f32 %v160
    %vm168 = vweird.f32 %v161
    %vm169 = vmor %vm167, %vm168
    %v170 = vsel %vm169, %v161, %v166
    %v171 = vsub.f32 %v146, %v156
    %v172 = vmul.f32 %v171, %v170
    %v173 = vperm.slane %v147, 0
    %v174 = vmul.f32 %v172, %v173
    %v175 = vperm.slane %v148, 0
    %v176 = vadd.f32 %v174, %v175
    %v177 = vld [vmem:[#allocation6 + $0x14] sm:$0x1]
    %v178 = vperm.slane %v177, 0
    %v180 = vsel %vm122, %v176, 0
    %182 = vmatpush.msra.mxu0 0.0
    %183 = vmatpush.msra.mxu0 0.0
    %184 = vmatpush.msra.mxu0 0.0
    %185 = vmatpush.msra.mxu0 0.0
    %186 = vmatpush.msra.mxu0 0.0
    %187 = vmatpush.msra.mxu0 0.0
    %188 = vmatpush.msra.mxu0 0.0
    %189 = vmatpush.msra.mxu0 0.0
    %190 = vmatpush.msra.mxu0 %v103
    %191 = vmatpush.msra.mxu0 %v102
    %192 = vmatpush.msra.mxu0 %v101
    %193 = vmatpush.msra.mxu0 %v100
    %194 = vmatpush.msra.mxu0 %v99
    %195 = vmatpush.msra.mxu0 %v98
    %196 = vmatpush.msra.mxu0 %v97
    %197 = vmatpush.msra.mxu0 %v96
    %198 = vmatmul.f32.gmra.mxu0 %v180
    %v199 = vpop.f32.mrf.mxu0
    %v200 = vadd.f32 %v178, %v199
    %201 = vdwg.mxu0
    %v202 = vmax.f32 %v200, 0.0
    %v203 = vld [vmem:[#allocation6 + $0x15] sm:$0x1]
    %v204 = vperm.slane %v203, 0
    %205 = vmatpush.msra.mxu0 %v119
    %206 = vmatpush.msra.mxu0 %v118
    %207 = vmatpush.msra.mxu0 %v117
    %208 = vmatpush.msra.mxu0 %v116
    %209 = vmatpush.msra.mxu0 %v115
    %210 = vmatpush.msra.mxu0 %v114
    %211 = vmatpush.msra.mxu0 %v113
    %212 = vmatpush.msra.mxu0 %v112
    %213 = vmatpush.msra.mxu0 %v111
    %214 = vmatpush.msra.mxu0 %v110
    %215 = vmatpush.msra.mxu0 %v109
    %216 = vmatpush.msra.mxu0 %v108
    %217 = vmatpush.msra.mxu0 %v107
    %218 = vmatpush.msra.mxu0 %v106
    %219 = vmatpush.msra.mxu0 %v105
    %220 = vmatpush.msra.mxu0 %v104
    %221 = vmatmul.f32.gmra.mxu0 %v202
    %v222 = vpop.f32.mrf.mxu0
    %v223 = vadd.f32 %v204, %v222
    %224 = vdwg.mxu0
    %v225 = vadd.f32 %v176, %v223
    %v226 = vld [vmem:[#allocation6 + $0x16] sm:$0x1]
    %v227 = vld [vmem:[#allocation6 + $0x17] sm:$0x1]
    %v228 = vsel %vm122, %v225, 0.0
    %229 = vadd.xlane.f32.xlu0 %v228
    %v230 = vpop.xlane.xlu0 %229
    %v231 = vmul.f32 %v225, %v225
    %v232 = vsel %vm122, %v231, 0.0
    %233 = vadd.xlane.f32.xlu0 %v232
    %v234 = vpop.xlane.xlu0 %233
    %v235 = vmul.f32 %v230, 0.015625
    %v236 = vmul.f32 %v234, 0.015625
    %v237 = vmul.f32 %v235, %v235
    %v238 = vsub.f32 %v236, %v237
    %v239 = vadd.f32 %v238, 1e-05
    %v240 = vrsqrt.pop %v239
    %v241 = vmul.f32 %v240, %v239
    %v242 = vmul.f32 %v241, %v240
    %v243 = vmul.f32 0.5, %v242
    %v244 = vsub.f32 1.5, %v243
    %v245 = vmul.f32 %v240, %v244
    %vm246 = vweird.f32 %v239
    %vm247 = vweird.f32 %v240
    %vm248 = vmor %vm246, %vm247
    %v249 = vsel %vm248, %v240, %v245
    %v250 = vsub.f32 %v225, %v235
    %v251 = vmul.f32 %v250, %v249
    %v252 = vperm.slane %v226, 0
    %v253 = vmul.f32 %v251, %v252
    %v254 = vperm.slane %v227, 0
    %v255 = vadd.f32 %v253, %v254
    %s256 = scalar_lea.vmem [#allocation4], 256
    %v257 = vld [vmem:[%s256] sm:$0xff]
    %v258 = vld [vmem:[%s256 + $0x8] sm:$0xff]
    %v259 = vld [vmem:[%s256 + $0x10] sm:$0xff]
    %v260 = vld [vmem:[%s256 + $0x18] sm:$0xff]
    %v261 = vld [vmem:[%s256 + $0x20] sm:$0xff]
    %v262 = vld [vmem:[%s256 + $0x28] sm:$0xff]
    %v263 = vld [vmem:[%s256 + $0x30] sm:$0xff]
    %v264 = vld [vmem:[%s256 + $0x38] sm:$0xff]
    %v265 = vld [vmem:[%s256 + $0x40] sm:$0xff]
    %v266 = vld [vmem:[%s256 + $0x48] sm:$0xff]
    %v267 = vld [vmem:[%s256 + $0x50] sm:$0xff]
    %v268 = vld [vmem:[%s256 + $0x58] sm:$0xff]
    %v269 = vld [vmem:[%s256 + $0x60] sm:$0xff]
    %v270 = vld [vmem:[%s256 + $0x68] sm:$0xff]
    %v271 = vld [vmem:[%s256 + $0x70] sm:$0xff]
    %v272 = vld [vmem:[%s256 + $0x78] sm:$0xff]
    %v273 = vld [vmem:[%s256 + $0x80] sm:$0xff]
    %v274 = vld [vmem:[%s256 + $0x88] sm:$0xff]
    %v275 = vld [vmem:[%s256 + $0x90] sm:$0xff]
    %v276 = vld [vmem:[%s256 + $0x98] sm:$0xff]
    %v277 = vld [vmem:[%s256 + $0xa0] sm:$0xff]
    %v278 = vld [vmem:[%s256 + $0xa8] sm:$0xff]
    %v279 = vld [vmem:[%s256 + $0xb0] sm:$0xff]
    %v280 = vld [vmem:[%s256 + $0xb8] sm:$0xff]
    %v281 = vld [vmem:[%s256 + $0xc0] sm:$0xff]
    %v282 = vld [vmem:[%s256 + $0xc8] sm:$0xff]
    %v283 = vld [vmem:[%s256 + $0xd0] sm:$0xff]
    %v284 = vld [vmem:[%s256 + $0xd8] sm:$0xff]
    %v285 = vld [vmem:[%s256 + $0xe0] sm:$0xff]
    %v286 = vld [vmem:[%s256 + $0xe8] sm:$0xff]
    %v287 = vld [vmem:[%s256 + $0xf0] sm:$0xff]
    %v288 = vld [vmem:[%s256 + $0xf8] sm:$0xff]
    %v289 = vld [vmem:[#allocation6 + $0x18] sm:$0x1]
    %v290 = vperm.slane %v289, 0
    %v292 = vsel %vm122, %v255, 0
    %294 = vmatpush.msra.mxu0 0.0
    %295 = vmatpush.msra.mxu0 0.0
    %296 = vmatpush.msra.mxu0 0.0
    %297 = vmatpush.msra.mxu0 0.0
    %298 = vmatpush.msra.mxu0 0.0
    %299 = vmatpush.msra.mxu0 0.0
    %300 = vmatpush.msra.mxu0 0.0
    %301 = vmatpush.msra.mxu0 0.0
    %302 = vmatpush.msra.mxu0 %v264
    %303 = vmatpush.msra.mxu0 %v263
    %304 = vmatpush.msra.mxu0 %v262
    %305 = vmatpush.msra.mxu0 %v261
    %306 = vmatpush.msra.mxu0 %v260
    %307 = vmatpush.msra.mxu0 %v259
    %308 = vmatpush.msra.mxu0 %v258
    %309 = vmatpush.msra.mxu0 %v257
    %310 = vmatmul.f32.gmra.mxu0 %v292
    %v311 = vpop.f32.mrf.mxu0
    %v312 = vadd.f32 %v290, %v311
    %313 = vdwg.mxu0
    %v314 = vadd.f32 %v255, %v312
    %v315 = vld [vmem:[#allocation6 + $0x19] sm:$0x1]
    %v316 = vld [vmem:[#allocation6 + $0x1a] sm:$0x1]
    %v317 = vsel %vm122, %v314, 0.0
    %318 = vadd.xlane.f32.xlu0 %v317
    %v319 = vpop.xlane.xlu0 %318
    %v320 = vmul.f32 %v314, %v314
    %v321 = vsel %vm122, %v320, 0.0
    %322 = vadd.xlane.f32.xlu0 %v321
    %v323 = vpop.xlane.xlu0 %322
    %v324 = vmul.f32 %v319, 0.015625
    %v325 = vmul.f32 %v323, 0.015625
    %v326 = vmul.f32 %v324, %v324
    %v327 = vsub.f32 %v325, %v326
    %v328 = vadd.f32 %v327, 1e-05
    %v329 = vrsqrt.pop %v328
    %v330 = vmul.f32 %v329, %v328
    %v331 = vmul.f32 %v330, %v329
    %v332 = vmul.f32 0.5, %v331
    %v333 = vsub.f32 1.5, %v332
    %v334 = vmul.f32 %v329, %v333
    %vm335 = vweird.f32 %v328
    %vm336 = vweird.f32 %v329
    %vm337 = vmor %vm335, %vm336
    %v338 = vsel %vm337, %v329, %v334
    %v339 = vsub.f32 %v314, %v324
    %v340 = vmul.f32 %v339, %v338
    %v341 = vperm.slane %v315, 0
    %v342 = vmul.f32 %v340, %v341
    %v343 = vperm.slane %v316, 0
    %v344 = vadd.f32 %v342, %v343
    %v345 = vld [vmem:[#allocation6 + $0x1b] sm:$0x1]
    %v346 = vperm.slane %v345, 0
    %v348 = vsel %vm122, %v344, 0
    %350 = vmatpush.msra.mxu0 0.0
    %351 = vmatpush.msra.mxu0 0.0
    %352 = vmatpush.msra.mxu0 0.0
    %353 = vmatpush.msra.mxu0 0.0
    %354 = vmatpush.msra.mxu0 0.0
    %355 = vmatpush.msra.mxu0 0.0
    %356 = vmatpush.msra.mxu0 0.0
    %357 = vmatpush.msra.mxu0 0.0
    %358 = vmatpush.msra.mxu0 %v272
    %359 = vmatpush.msra.mxu0 %v271
    %360 = vmatpush.msra.mxu0 %v270
    %361 = vmatpush.msra.mxu0 %v269
    %362 = vmatpush.msra.mxu0 %v268
    %363 = vmatpush.msra.mxu0 %v267
    %364 = vmatpush.msra.mxu0 %v266
    %365 = vmatpush.msra.mxu0 %v265
    %366 = vmatmul.f32.gmra.mxu0 %v348
    %v367 = vpop.f32.mrf.mxu0
    %v368 = vadd.f32 %v346, %v367
    %369 = vdwg.mxu0
    %v370 = vmax.f32 %v368, 0.0
    %v371 = vld [vmem:[#allocation6 + $0x1c] sm:$0x1]
    %v372 = vperm.slane %v371, 0
    %373 = vmatpush.msra.mxu0 %v288
    %374 = vmatpush.msra.mxu0 %v287
    %375 = vmatpush.msra.mxu0 %v286
    %376 = vmatpush.msra.mxu0 %v285
    %377 = vmatpush.msra.mxu0 %v284
    %378 = vmatpush.msra.mxu0 %v283
    %379 = vmatpush.msra.mxu0 %v282
    %380 = vmatpush.msra.mxu0 %v281
    %381 = vmatpush.msra.mxu0 %v280
    %382 = vmatpush.msra.mxu0 %v279
    %383 = vmatpush.msra.mxu0 %v278
    %384 = vmatpush.msra.mxu0 %v277
    %385 = vmatpush.msra.mxu0 %v276
    %386 = vmatpush.msra.mxu0 %v275
    %387 = vmatpush.msra.mxu0 %v274
    %388 = vmatpush.msra.mxu0 %v273
    %389 = vmatmul.f32.gmra.mxu0 %v370
    %v390 = vpop.f32.mrf.mxu0
    %v391 = vadd.f32 %v372, %v390
    %392 = vdwg.mxu0
    %v393 = vadd.f32 %v344, %v391
    %v394 = vld [vmem:[#allocation6 + $0x1d] sm:$0x1]
    %v395 = vld [vmem:[#allocation6 + $0x1e] sm:$0x1]
    %v396 = vsel %vm122, %v393, 0.0
    %397 = vadd.xlane.f32.xlu0 %v396
    %v398 = vpop.xlane.xlu0 %397
    %v399 = vmul.f32 %v393, %v393
    %v400 = vsel %vm122, %v399, 0.0
    %401 = vadd.xlane.f32.xlu0 %v400
    %v402 = vpop.xlane.xlu0 %401
    %v403 = vmul.f32 %v398, 0.015625
    %v404 = vmul.f32 %v402, 0.015625
    %v405 = vmul.f32 %v403, %v403
    %v406 = vsub.f32 %v404, %v405
    %v407 = vadd.f32 %v406, 1e-05
    %v408 = vrsqrt.pop %v407
    %v409 = vmul.f32 %v408, %v407
    %v410 = vmul.f32 %v409, %v408
    %v411 = vmul.f32 0.5, %v410
    %v412 = vsub.f32 1.5, %v411
    %v413 = vmul.f32 %v408, %v412
    %vm414 = vweird.f32 %v407
    %vm415 = vweird.f32 %v408
    %vm416 = vmor %vm414, %vm415
    %v417 = vsel %vm416, %v408, %v413
    %v418 = vsub.f32 %v393, %v403
    %v419 = vmul.f32 %v418, %v417
    %v420 = vperm.slane %v394, 0
    %v421 = vmul.f32 %v419, %v420
    %v422 = vperm.slane %v395, 0
    %v423 = vadd.f32 %v421, %v422
    %v424 = vld [vmem:[#allocation6 + $0x1f] sm:$0x1]
    %v425 = vld [vmem:[#allocation6 + $0x20] sm:$0x1]
    %v426 = vperm.slane %v424, 0
    %v427 = vmul.f32 %v423, %v426
    %v428 = vsel %vm122, %v427, 0.0
    %429 = vadd.xlane.f32.xlu0 %v428
    %v430 = vpop.xlane.xlu0 %429
    %v431 = vperm.slane %v425, 0
    %v432 = vadd.f32 %v430, %v431
    %vm433 = vcmask 7168
    %434 = vst.msk [vmem:[%s3] sm:$0xff] %vm433, %v432
    // Predicated region
    $region26: #{_soh_forward.1} parent=1 // pred_check
      _
    $region27: #{_soh_forward.1} parent=1 // pred_check_branch
      %436 = sbr.rel (0) target = $region29
    $region28: #{_soh_forward.1} parent=1 // pred_region
      _
    $region29: #{_soh_forward.1} parent=1 // pred_fallthru
      _
    // Predicated region
    $region30: #{_soh_forward.1} parent=1 // pred_check
      _
    $region31: #{_soh_forward.1} parent=1 // pred_check_branch
      %438 = sbr.rel (0) target = $region33
    $region32: #{_soh_forward.1} parent=1 // pred_region
      _
    $region33: #{_soh_forward.1} parent=1 // pred_fallthru
      _
    %439 = vsyncpa [#allocation3], 1
    %440 = vsyncpa [#allocation5], 1

</llo_original>
